<compile_context>
chip_gen: v7x
topology: tpu7x:2x2x1
jax: 0.10.0
libtpu: 0.0.40
codegen_flags: <defaults>
</compile_context>

<pallas_src>
import functools

import jax
import jax.numpy as jnp
from jax.experimental import pallas as pl
from jax.experimental.pallas import tpu as pltpu


def _reward_mlp_kernel(sT_ref, aT_ref, w1sT_ref, w1aT_ref, b1_ref,
                       w2T_ref, b2_ref, w3_ref, o_ref):
    """One batch tile per grid step; batch lives on the lane axis.

    sT/aT : (Sd, TB) / (Ad, TB) activation tiles (compute dtype)
    w1sT  : (H, Sd), w1aT: (H, Ad), w2T: (H, H)  (compute dtype)
    b1/b2 : (H, 1) f32, w3: (H, 1) f32
    o     : (1, TB) f32 lane-dense row
    """
    # Layer 1: split-K over the state/action halves of W1^T (never materializes
    # the concatenated input).
    h1 = jnp.dot(w1sT_ref[...], sT_ref[...], preferred_element_type=jnp.float32)
    h1 = h1 + jnp.dot(w1aT_ref[...], aT_ref[...],
                      preferred_element_type=jnp.float32)
    w2 = w2T_ref[...]
    h1 = jnp.maximum(h1 + b1_ref[...], 0.0).astype(w2.dtype)          # (H, TB)
    # Layer 2.
    h2 = jnp.dot(w2, h1, preferred_element_type=jnp.float32)
    h2 = jnp.maximum(h2 + b2_ref[...], 0.0)                           # (H, TB)
    # Layer 3 (out_features == 1): VPU multiply + sublane (XLU) reduction
    # instead of an M=1 MXU pass; result is a lane-dense (1, TB) row.
    o_ref[...] = jnp.sum(h2 * w3_ref[...], axis=0, keepdims=True)


def _round_up(x, m):
    return ((x + m - 1) // m) * m


def _batch_dim_semantics():
    """CORE_PARALLEL on v7x (2 TensorCores/chip); plain "parallel" elsewhere."""
    try:
        kind = jax.devices()[0].device_kind.lower()
    except Exception:  # defensive: CPU-hosted tracing etc.
        kind = ""
    if "v7" in kind and hasattr(pltpu, "CORE_PARALLEL"):
        return (pltpu.CORE_PARALLEL,), True
    return ("parallel",), False


def reward_net_forward(state, action, params, *, tile_b=2048,
                       compute_dtype=jnp.float32):
    """Pallas forward pass for RewardNet.

    state:  (B, state_dim), action: (B, action_dim)
    params: w1 (D,H), b1 (1,H), w2 (H,H), b2 (1,H), w3 (H,1), b3 (1,1)
    returns (B, 1) float32
    """
    B, Sd = state.shape
    Ba, Ad = action.shape
    assert B == Ba, "state/action batch mismatch"
    D = Sd + Ad
    H = params["w1"].shape[1]

    # Batch-on-lane layout: one-time XLA transposes outside the kernel.
    sT = state.astype(compute_dtype).T                      # (Sd, B)
    aT = action.astype(compute_dtype).T                     # (Ad, B)
    w1sT = params["w1"][:Sd, :].T.astype(compute_dtype)     # (H, Sd)
    w1aT = params["w1"][Sd:, :].T.astype(compute_dtype)     # (H, Ad)
    w2T = params["w2"].T.astype(compute_dtype)              # (H, H)
    b1c = jnp.reshape(params["b1"], (H, 1)).astype(jnp.float32)
    b2c = jnp.reshape(params["b2"], (H, 1)).astype(jnp.float32)
    w3c = jnp.reshape(params["w3"], (H, 1)).astype(jnp.float32)

    dims, core_parallel = _batch_dim_semantics()

    # Tile selection: big tiles amortize the ~0.35us/step fixed overhead; the
    # per-tile working set is only ~2*TB*(D+1)*4 B, far below any VMEM limit.
    # Lane-axis blocks must be 128-multiples unless one block spans the whole
    # (padded) batch.
    if B > tile_b:
        TB = _round_up(tile_b, 128)
    elif core_parallel and B >= 256:
        TB = _round_up(pl.cdiv(B, 2), 128)   # >=2 grid steps -> both v7x TCs busy
    else:
        TB = _round_up(max(B, 1), 8)
    B_pad = _round_up(B, TB)
    if B_pad != B:
        pad = B_pad - B
        sT = jnp.pad(sT, ((0, 0), (0, pad)))
        aT = jnp.pad(aT, ((0, 0), (0, pad)))

    grid = (B_pad // TB,)

    act_spec = lambda d: pl.BlockSpec((d, TB), lambda i: (0, i))      # streamed
    # Constant index_map => weights DMA'd once and stay VMEM-resident.
    # TODO(synk): at large H on v7x add pipeline_mode=pl.Buffered(1) here so w2T
    # is not double-buffered (dead duplication against the 64 MiB VMEM).
    const_spec = lambda shape: pl.BlockSpec(shape, lambda i: (0, 0))

    act_bytes = jnp.dtype(compute_dtype).itemsize
    cost = pl.CostEstimate(
        flops=2 * B_pad * (D * H + H * H + H),
        transcendentals=0,
        bytes_accessed=(act_bytes * (B_pad * D + (D + H) * H)
                        + 4 * (B_pad + 3 * H)),
    )

    out_row = pl.pallas_call(
        _reward_mlp_kernel,
        out_shape=jax.ShapeDtypeStruct((1, B_pad), jnp.float32),
        grid=grid,
        in_specs=[
            act_spec(Sd),           # state^T tile
            act_spec(Ad),           # action^T tile
            const_spec((H, Sd)),    # W1_s^T
            const_spec((H, Ad)),    # W1_a^T
            const_spec((H, 1)),     # b1 column
            const_spec((H, H)),     # W2^T
            const_spec((H, 1)),     # b2 column
            const_spec((H, 1)),     # w3 column
        ],
        out_specs=pl.BlockSpec((1, TB), lambda i: (0, i)),
        compiler_params=pltpu.CompilerParams(dimension_semantics=dims),
        cost_estimate=cost,
    )(sT, aT, w1sT, w1aT, b1c, w2T, b2c, w3c)

    # b3 added here; padded batch columns sliced off.
    b3 = jnp.reshape(params["b3"], (1, 1)).astype(jnp.float32)
    return out_row[0, :B].reshape(B, 1) + b3


def init_params(key, state_dim, action_dim, hidden_dim):
    """Deterministic synthetic init (PyTorch-Linear-style uniform ranges)."""
    D = state_dim + action_dim
    ks = jax.random.split(key, 6)

    def lin(kw, kb, fan_in, fan_out):
        bound = 1.0 / jnp.sqrt(fan_in)
        w = jax.random.uniform(kw, (fan_in, fan_out), jnp.float32, -bound, bound)
        b = jax.random.uniform(kb, (1, fan_out), jnp.float32, -bound, bound)
        return w, b

    w1, b1 = lin(ks[0], ks[1], D, hidden_dim)
    w2, b2 = lin(ks[2], ks[3], hidden_dim, hidden_dim)
    w3, b3 = lin(ks[4], ks[5], hidden_dim, 1)
    return {"w1": w1, "b1": b1, "w2": w2, "b2": b2, "w3": w3, "b3": b3}


def reward_net_reference(state, action, params):
    """Pure-JAX reference matching the PyTorch forward."""
    x = jnp.concatenate([state, action], axis=-1)
    h = jnp.maximum(x @ params["w1"] + params["b1"], 0.0)
    h = jnp.maximum(h @ params["w2"] + params["b2"], 0.0)
    return h @ params["w3"] + params["b3"]


if __name__ == "__main__":
    key = jax.random.PRNGKey(0)
    k_state, k_action, k_params = jax.random.split(key, 3)

    B, STATE_DIM, ACTION_DIM, HIDDEN_DIM = 8, 16, 4, 32

    state = jax.random.normal(k_state, (B, STATE_DIM), dtype=jnp.float32)
    action = jax.random.normal(k_action, (B, ACTION_DIM), dtype=jnp.float32)
    params = init_params(k_params, STATE_DIM, ACTION_DIM, HIDDEN_DIM)

    fwd = jax.jit(functools.partial(reward_net_forward, tile_b=2048))
    out = jax.block_until_ready(fwd(state, action, params))
    ref = reward_net_reference(state, action, params)
    assert out.shape == (B, 1)
    assert jnp.allclose(out, ref, atol=1e-5, rtol=1e-5), "mismatch vs reference"

    # Multi-tile grid (B not a multiple of the tile): exercises padding plus the
    # 128-aligned lane tiling path.
    B2 = 300
    state2 = jax.random.normal(jax.random.PRNGKey(1), (B2, STATE_DIM), jnp.float32)
    action2 = jax.random.normal(jax.random.PRNGKey(2), (B2, ACTION_DIM), jnp.float32)
    out2 = jax.block_until_ready(
        reward_net_forward(state2, action2, params, tile_b=128))
    ref2 = reward_net_reference(state2, action2, params)
    assert out2.shape == (B2, 1)
    assert jnp.allclose(out2, ref2, atol=1e-5, rtol=1e-5), "mismatch (tiled)"

    # bf16 streaming path (halves activation/weight HBM traffic on v5e/v6e);
    # accumulation stays f32, so only small numeric drift vs the f32 reference.
    out3 = jax.block_until_ready(
        reward_net_forward(state2, action2, params, tile_b=128,
                           compute_dtype=jnp.bfloat16))
    assert out3.shape == (B2, 1)
    assert jnp.allclose(out3, ref2, atol=5e-2, rtol=5e-2), "mismatch (bf16)"

    print("KERNEL_OK")
</pallas_src>

<mosaic_0001>
module attributes {stable_mosaic.version = 11 : i64} {
  func.func @_reward_mlp_kernel(%arg0: i32, %arg1: memref<16x8xf32, #tpu.memory_space<vmem>>, %arg2: memref<4x8xf32, #tpu.memory_space<vmem>>, %arg3: memref<32x16xf32, #tpu.memory_space<vmem>>, %arg4: memref<32x4xf32, #tpu.memory_space<vmem>>, %arg5: memref<32x1xf32, #tpu.memory_space<vmem>>, %arg6: memref<32x32xf32, #tpu.memory_space<vmem>>, %arg7: memref<32x1xf32, #tpu.memory_space<vmem>>, %arg8: memref<32x1xf32, #tpu.memory_space<vmem>>, %arg9: memref<1x8xf32, #tpu.memory_space<vmem>>) attributes {dimension_semantics = [#tpu.dimension_semantics<parallel>], iteration_bounds = array<i64: 1>, scalar_prefetch = 0 : i64, scratch_operands = 0 : i64, tpu.core_type = #tpu.core_type<tc>, window_params = [{transform_indices = @transform_0, window_bounds = array<i64: 16, 8>}, {transform_indices = @transform_1, window_bounds = array<i64: 4, 8>}, {pipeline_mode = #tpu.pipeline_mode<synchronous>, transform_indices = @transform_2, window_bounds = array<i64: 32, 16>}, {pipeline_mode = #tpu.pipeline_mode<synchronous>, transform_indices = @transform_3, window_bounds = array<i64: 32, 4>}, {pipeline_mode = #tpu.pipeline_mode<synchronous>, transform_indices = @transform_4, window_bounds = array<i64: 32, 1>}, {pipeline_mode = #tpu.pipeline_mode<synchronous>, transform_indices = @transform_5, window_bounds = array<i64: 32, 32>}, {pipeline_mode = #tpu.pipeline_mode<synchronous>, transform_indices = @transform_6, window_bounds = array<i64: 32, 1>}, {pipeline_mode = #tpu.pipeline_mode<synchronous>, transform_indices = @transform_7, window_bounds = array<i64: 32, 1>}, {transform_indices = @transform_8, window_bounds = array<i64: 1, 8>}]} {
    %c0 = arith.constant 0 : index
    %c0_0 = arith.constant 0 : index
    %0 = vector.load %arg3[%c0, %c0_0] : memref<32x16xf32, #tpu.memory_space<vmem>>, vector<32x16xf32>
    %c0_1 = arith.constant 0 : index
    %c0_2 = arith.constant 0 : index
    %1 = vector.load %arg1[%c0_1, %c0_2] : memref<16x8xf32, #tpu.memory_space<vmem>>, vector<16x8xf32>
    %cst = arith.constant dense<0.000000e+00> : vector<32x8xf32>
    %2 = tpu.matmul %0, %1, %cst {dimension_numbers = #tpu.dot_dimension_numbers<[1], [0], [0], [1], [0, 0, 1, 1], [], []>} : vector<32x16xf32>, vector<16x8xf32>, vector<32x8xf32> -> vector<32x8xf32>
    %c0_3 = arith.constant 0 : index
    %c0_4 = arith.constant 0 : index
    %3 = vector.load %arg4[%c0_3, %c0_4] : memref<32x4xf32, #tpu.memory_space<vmem>>, vector<32x4xf32>
    %c0_5 = arith.constant 0 : index
    %c0_6 = arith.constant 0 : index
    %4 = vector.load %arg2[%c0_5, %c0_6] : memref<4x8xf32, #tpu.memory_space<vmem>>, vector<4x8xf32>
    %cst_7 = arith.constant dense<0.000000e+00> : vector<32x8xf32>
    %5 = tpu.matmul %3, %4, %cst_7 {dimension_numbers = #tpu.dot_dimension_numbers<[1], [0], [0], [1], [0, 0, 1, 1], [], []>} : vector<32x4xf32>, vector<4x8xf32>, vector<32x8xf32> -> vector<32x8xf32>
    %6 = arith.addf %2, %5 : vector<32x8xf32>
    %c0_8 = arith.constant 0 : index
    %c0_9 = arith.constant 0 : index
    %7 = vector.load %arg6[%c0_8, %c0_9] : memref<32x32xf32, #tpu.memory_space<vmem>>, vector<32x32xf32>
    %c0_10 = arith.constant 0 : index
    %c0_11 = arith.constant 0 : index
    %8 = vector.load %arg5[%c0_10, %c0_11] : memref<32x1xf32, #tpu.memory_space<vmem>>, vector<32x1xf32>
    %9 = vector.broadcast %8 : vector<32x1xf32> to vector<32x8xf32>
    %10 = arith.addf %6, %9 : vector<32x8xf32>
    %cst_12 = arith.constant 0.000000e+00 : f32
    %11 = vector.broadcast %cst_12 : f32 to vector<32x8xf32>
    %12 = arith.maximumf %10, %11 : vector<32x8xf32>
    %cst_13 = arith.constant dense<0.000000e+00> : vector<32x8xf32>
    %13 = tpu.matmul %7, %12, %cst_13 {dimension_numbers = #tpu.dot_dimension_numbers<[1], [0], [0], [1], [0, 0, 1, 1], [], []>} : vector<32x32xf32>, vector<32x8xf32>, vector<32x8xf32> -> vector<32x8xf32>
    %c0_14 = arith.constant 0 : index
    %c0_15 = arith.constant 0 : index
    %14 = vector.load %arg7[%c0_14, %c0_15] : memref<32x1xf32, #tpu.memory_space<vmem>>, vector<32x1xf32>
    %15 = vector.broadcast %14 : vector<32x1xf32> to vector<32x8xf32>
    %16 = arith.addf %13, %15 : vector<32x8xf32>
    %cst_16 = arith.constant 0.000000e+00 : f32
    %17 = vector.broadcast %cst_16 : f32 to vector<32x8xf32>
    %18 = arith.maximumf %16, %17 : vector<32x8xf32>
    %c0_17 = arith.constant 0 : index
    %c0_18 = arith.constant 0 : index
    %19 = vector.load %arg8[%c0_17, %c0_18] : memref<32x1xf32, #tpu.memory_space<vmem>>, vector<32x1xf32>
    %20 = vector.broadcast %19 : vector<32x1xf32> to vector<32x8xf32>
    %21 = arith.mulf %18, %20 : vector<32x8xf32>
    %cst_19 = arith.constant dense<0.000000e+00> : vector<8xf32>
    %22 = vector.multi_reduction <add>, %21, %cst_19 [0] : vector<32x8xf32> to vector<8xf32>
    %23 = vector.shape_cast %22 : vector<8xf32> to vector<1x8xf32>
    %c0_20 = arith.constant 0 : index
    %c0_21 = arith.constant 0 : index
    %24 = vector.load %arg9[%c0_20, %c0_21] : memref<1x8xf32, #tpu.memory_space<vmem>>, vector<1x8xf32>
    tpu.vector_store %arg9[%c0_20, %c0_21], %23 {strides = array<i32>} : memref<1x8xf32, #tpu.memory_space<vmem>>, vector<1x8xf32>,
    return
  }
  func.func @transform_0(%arg0: i32) -> (i32, i32) {
    %c0_i32 = arith.constant 0 : i32
    %c0_i32_0 = arith.constant 0 : i32
    return %c0_i32, %arg0 : i32, i32
  }
  func.func @transform_1(%arg0: i32) -> (i32, i32) {
    %c0_i32 = arith.constant 0 : i32
    %c0_i32_0 = arith.constant 0 : i32
    return %c0_i32, %arg0 : i32, i32
  }
  func.func @transform_2(%arg0: i32) -> (i32, i32) {
    %c0_i32 = arith.constant 0 : i32
    %c0_i32_0 = arith.constant 0 : i32
    %c0_i32_1 = arith.constant 0 : i32
    return %c0_i32, %c0_i32_0 : i32, i32
  }
  func.func @transform_3(%arg0: i32) -> (i32, i32) {
    %c0_i32 = arith.constant 0 : i32
    %c0_i32_0 = arith.constant 0 : i32
    %c0_i32_1 = arith.constant 0 : i32
    return %c0_i32, %c0_i32_0 : i32, i32
  }
  func.func @transform_4(%arg0: i32) -> (i32, i32) {
    %c0_i32 = arith.constant 0 : i32
    %c0_i32_0 = arith.constant 0 : i32
    %c0_i32_1 = arith.constant 0 : i32
    return %c0_i32, %c0_i32_0 : i32, i32
  }
  func.func @transform_5(%arg0: i32) -> (i32, i32) {
    %c0_i32 = arith.constant 0 : i32
    %c0_i32_0 = arith.constant 0 : i32
    %c0_i32_1 = arith.constant 0 : i32
    return %c0_i32, %c0_i32_0 : i32, i32
  }
  func.func @transform_6(%arg0: i32) -> (i32, i32) {
    %c0_i32 = arith.constant 0 : i32
    %c0_i32_0 = arith.constant 0 : i32
    %c0_i32_1 = arith.constant 0 : i32
    return %c0_i32, %c0_i32_0 : i32, i32
  }
  func.func @transform_7(%arg0: i32) -> (i32, i32) {
    %c0_i32 = arith.constant 0 : i32
    %c0_i32_0 = arith.constant 0 : i32
    %c0_i32_1 = arith.constant 0 : i32
    return %c0_i32, %c0_i32_0 : i32, i32
  }
  func.func @transform_8(%arg0: i32) -> (i32, i32) {
    %c0_i32 = arith.constant 0 : i32
    %c0_i32_0 = arith.constant 0 : i32
    return %c0_i32, %arg0 : i32, i32
  }
}

</mosaic_0001>

<llo_original>
// kernel: reward_net_forward.1
$region0: #{reward_net_forward.1}
  #allocation0 [shape = 'u32[]', space=smem, size = 0x4, offset = 0x4, fixed_abs, tag = 'smem constant byte address 0x4 - core index']
  #allocation1 [shape = 'u32[144,128]{1,0:T(1,128)}', space=vmem, size = 0x12000, scoped, tag = 'internal scratch']
  %s0 = inlined_call_operand.vmem [shape: f32[16,8], index: 0, kind: input, shape index: {}]
  %s1 = inlined_call_operand.vmem [shape: f32[4,8], index: 1, kind: input, shape index: {}]
  %s2 = inlined_call_operand.vmem [shape: f32[32,16], index: 2, kind: input, shape index: {}]
  %s3 = inlined_call_operand.vmem [shape: f32[32,4], index: 3, kind: input, shape index: {}]
  %s4 = inlined_call_operand.vmem [shape: f32[32,1], index: 4, kind: input, shape index: {}]
  %s5 = inlined_call_operand.vmem [shape: f32[32,32], index: 5, kind: input, shape index: {}]
  %s6 = inlined_call_operand.vmem [shape: f32[32,1], index: 6, kind: input, shape index: {}]
  %s7 = inlined_call_operand.vmem [shape: f32[32,1], index: 7, kind: input, shape index: {}]
  %s8 = inlined_call_operand.vmem [shape: f32[1,8], index: 8, kind: output, shape index: {}]
  %s9 = sld [smem:[#allocation0]]
  $region42: #{reward_net_forward.1} parent=0
    _
  %s11 = ssub.s32 1, %s9
  %s12 = scalar_select 0, %s11, %s9
  // Predicated region
  $region2: #{reward_net_forward.1} parent=0 // pred_check
    _
  $region3: #{reward_net_forward.1} parent=0 // pred_check_branch
    %14 = sbr.rel (0) target = $region5
  $region4: #{reward_net_forward.1} parent=0 // pred_region
    _
  $region5: #{reward_net_forward.1} parent=0 // pred_fallthru
    _
  // Predicated region
  $region6: #{reward_net_forward.1} parent=0 // pred_check
    _
  $region7: #{reward_net_forward.1} parent=0 // pred_check_branch
    %16 = sbr.rel (0) target = $region9
  $region8: #{reward_net_forward.1} parent=0 // pred_region
    _
  $region9: #{reward_net_forward.1} parent=0 // pred_fallthru
    _
  // Predicated region
  $region10: #{reward_net_forward.1} parent=0 // pred_check
    _
  $region11: #{reward_net_forward.1} parent=0 // pred_check_branch
    %18 = sbr.rel (0) target = $region13
  $region12: #{reward_net_forward.1} parent=0 // pred_region
    _
  $region13: #{reward_net_forward.1} parent=0 // pred_fallthru
    _
  // Predicated region
  $region14: #{reward_net_forward.1} parent=0 // pred_check
    _
  $region15: #{reward_net_forward.1} parent=0 // pred_check_branch
    %20 = sbr.rel (0) target = $region17
  $region16: #{reward_net_forward.1} parent=0 // pred_region
    _
  $region17: #{reward_net_forward.1} parent=0 // pred_fallthru
    _
  // Predicated region
  $region18: #{reward_net_forward.1} parent=0 // pred_check
    _
  $region19: #{reward_net_forward.1} parent=0 // pred_check_branch
    %22 = sbr.rel (0) target = $region21
  $region20: #{reward_net_forward.1} parent=0 // pred_region
    _
  $region21: #{reward_net_forward.1} parent=0 // pred_fallthru
    _
  // Predicated region
  $region22: #{reward_net_forward.1} parent=0 // pred_check
    _
  $region23: #{reward_net_forward.1} parent=0 // pred_check_branch
    %24 = sbr.rel (0) target = $region25
  $region24: #{reward_net_forward.1} parent=0 // pred_region
    _
  $region25: #{reward_net_forward.1} parent=0 // pred_fallthru
    _
  // Predicated region
  $region26: #{reward_net_forward.1} parent=0 // pred_check
    _
  $region27: #{reward_net_forward.1} parent=0 // pred_check_branch
    %26 = sbr.rel (0) target = $region29
  $region28: #{reward_net_forward.1} parent=0 // pred_region
    _
  $region29: #{reward_net_forward.1} parent=0 // pred_fallthru
    _
  // Predicated region
  $region30: #{reward_net_forward.1} parent=0 // pred_check
    _
  $region31: #{reward_net_forward.1} parent=0 // pred_check_branch
    %28 = sbr.rel (0) target = $region33
  $region32: #{reward_net_forward.1} parent=0 // pred_region
    _
  $region33: #{reward_net_forward.1} parent=0 // pred_fallthru
    _
  %v29 = vld [vmem:[%s2] sm:$0xff]
  %v30 = vld [vmem:[%s2 + $0x8] sm:$0xff]
  %v31 = vld [vmem:[%s2 + $0x10] sm:$0xff]
  %v32 = vld [vmem:[%s2 + $0x18] sm:$0xff]
  %v33 = vld [vmem:[%s0] sm:$0xff]
  %v34 = vld [vmem:[%s0 + $0x8] sm:$0xff]
  %v35 = vld [vmem:[%s3] sm:$0xff]
  %v36 = vld [vmem:[%s3 + $0x8] sm:$0xff]
  %v37 = vld [vmem:[%s3 + $0x10] sm:$0xff]
  %v38 = vld [vmem:[%s3 + $0x18] sm:$0xff]
  %v39 = vld [vmem:[%s1] sm:$0xf]
  %vm40 = vcmask 31744
  %v42 = vsel %vm40, %v35, 0
  %v45 = vsel %vm40, %v36, 0
  %v48 = vsel %vm40, %v37, 0
  %v51 = vsel %vm40, %v38, 0
  %vm53 = vcmask 1043456
  %v55 = vsel %vm53, %v39, 0
  %57 = vmatprep.subr.mxu0 0.0
  %58 = vmatpush1.msra.mxu0 %v55
  %59 = vmatprep.subr.mxu0 0.0
  %60 = vmatpush1.msra.mxu0 0.0
  %61 = vmatprep.subr.mxu0 0.0
  %62 = vmatpush1.msra.mxu0 0.0
  %63 = vmatprep.subr.mxu0 0.0
  %64 = vmatpush1.msra.mxu0 0.0
  %65 = vmatprep.subr.mxu0 0.0
  %66 = vmatpush1.msra.mxu0 0.0
  %67 = vmatprep.subr.mxu0 0.0
  %68 = vmatpush1.msra.mxu0 0.0
  %69 = vmatprep.subr.mxu0 0.0
  %70 = vmatpush1.msra.mxu0 0.0
  %71 = vmatprep.subr.mxu0 0.0
  %72 = vmatpush1.msra.mxu0 0.0
  %73 = vmatprep.subr.mxu0 0.0
  %74 = vmatpush1.msra.mxu0 0.0
  %75 = vmatprep.subr.mxu0 0.0
  %76 = vmatpush1.msra.mxu0 0.0
  %77 = vmatprep.subr.mxu0 0.0
  %78 = vmatpush1.msra.mxu0 0.0
  %79 = vmatprep.subr.mxu0 0.0
  %80 = vmatpush1.msra.mxu0 0.0
  %81 = vmatprep.subr.mxu0 0.0
  %82 = vmatpush1.msra.mxu0 0.0
  %83 = vmatprep.subr.mxu0 0.0
  %84 = vmatpush1.msra.mxu0 0.0
  %85 = vmatprep.subr.mxu0 0.0
  %86 = vmatpush1.msra.mxu0 0.0
  %87 = vmatprep.subr.mxu0 0.0
  %88 = vmatpush1.msra.mxu0 0.0
  %89 = vmatprep.subr.mxu0 0.0
  %90 = vmatpush1.msra.mxu0 0.0
  %91 = vmatprep.subr.mxu0 0.0
  %92 = vmatpush1.msra.mxu0 0.0
  %93 = vmatprep.subr.mxu0 0.0
  %94 = vmatpush1.msra.mxu0 0.0
  %95 = vmatprep.subr.mxu0 0.0
  %96 = vmatpush1.msra.mxu0 0.0
  %97 = vmatprep.subr.mxu0 0.0
  %98 = vmatpush1.msra.mxu0 0.0
  %99 = vmatprep.subr.mxu0 0.0
  %100 = vmatpush1.msra.mxu0 0.0
  %101 = vmatprep.subr.mxu0 0.0
  %102 = vmatpush1.msra.mxu0 0.0
  %103 = vmatprep.subr.mxu0 0.0
  %104 = vmatpush1.msra.mxu0 0.0
  %105 = vmatprep.subr.mxu0 0.0
  %106 = vmatpush1.msra.mxu0 0.0
  %107 = vmatprep.subr.mxu0 0.0
  %108 = vmatpush1.msra.mxu0 0.0
  %109 = vmatprep.subr.mxu0 0.0
  %110 = vmatpush1.msra.mxu0 0.0
  %111 = vmatprep.subr.mxu0 0.0
  %112 = vmatpush1.msra.mxu0 0.0
  %113 = vmatprep.subr.mxu0 0.0
  %114 = vmatpush1.msra.mxu0 0.0
  %115 = vmatprep.subr.mxu0 0.0
  %116 = vmatpush1.msra.mxu0 0.0
  %117 = vmatprep.subr.mxu0 0.0
  %118 = vmatpush1.msra.mxu0 0.0
  %119 = vmatprep.subr.mxu0 0.0
  %120 = vmatpush1.msra.mxu0 0.0
  %121 = vmatprep.mubr.f32.mxu0 0.0
  %122 = vmatmul.mubr.f32.gmra.mrb[0].mxu0 %v42
  %v123 = vpop.f32.mrb[0].mxu0
  %v124 = vadd.f32 0.0, %v123
  %v125 = vpop.f32.mrb[0].mxu0
  %126 = vmatprep.mubr.f32.mxu0 0.0
  %127 = vmatmul.mubr.f32.gmra.mrb[0].mxu0 %v45
  %v128 = vpop.f32.mrb[0].mxu0
  %v129 = vadd.f32 0.0, %v128
  %v130 = vpop.f32.mrb[0].mxu0
  %131 = vmatprep.mubr.f32.mxu0 0.0
  %132 = vmatmul.mubr.f32.gmra.mrb[0].mxu0 %v48
  %v133 = vpop.f32.mrb[0].mxu0
  %v134 = vadd.f32 0.0, %v133
  %v135 = vpop.f32.mrb[0].mxu0
  %136 = vmatprep.mubr.f32.mxu0 0.0
  %137 = vmatmul.mubr.f32.gmra.mrb[0].mxu0 %v51
  %v138 = vpop.f32.mrb[0].mxu0
  %v139 = vadd.f32 0.0, %v138
  %v140 = vpop.f32.mrb[0].mxu0
  %141 = vdwg.mxu0
  %vm142 = vcmask 130048
  %v144 = vsel %vm142, %v29, 0
  %v147 = vsel %vm142, %v30, 0
  %v150 = vsel %vm142, %v31, 0
  %v153 = vsel %vm142, %v32, 0
  %155 = vmatprep.subr.mxu0 0.0
  %156 = vmatpush1.msra.mxu0 %v33
  %157 = vmatprep.subr.mxu0 0.0
  %158 = vmatpush1.msra.mxu0 %v34
  %159 = vmatprep.subr.mxu0 0.0
  %160 = vmatpush1.msra.mxu0 0.0
  %161 = vmatprep.subr.mxu0 0.0
  %162 = vmatpush1.msra.mxu0 0.0
  %163 = vmatprep.subr.mxu0 0.0
  %164 = vmatpush1.msra.mxu0 0.0
  %165 = vmatprep.subr.mxu0 0.0
  %166 = vmatpush1.msra.mxu0 0.0
  %167 = vmatprep.subr.mxu0 0.0
  %168 = vmatpush1.msra.mxu0 0.0
  %169 = vmatprep.subr.mxu0 0.0
  %170 = vmatpush1.msra.mxu0 0.0
  %171 = vmatprep.subr.mxu0 0.0
  %172 = vmatpush1.msra.mxu0 0.0
  %173 = vmatprep.subr.mxu0 0.0
  %174 = vmatpush1.msra.mxu0 0.0
  %175 = vmatprep.subr.mxu0 0.0
  %176 = vmatpush1.msra.mxu0 0.0
  %177 = vmatprep.subr.mxu0 0.0
  %178 = vmatpush1.msra.mxu0 0.0
  %179 = vmatprep.subr.mxu0 0.0
  %180 = vmatpush1.msra.mxu0 0.0
  %181 = vmatprep.subr.mxu0 0.0
  %182 = vmatpush1.msra.mxu0 0.0
  %183 = vmatprep.subr.mxu0 0.0
  %184 = vmatpush1.msra.mxu0 0.0
  %185 = vmatprep.subr.mxu0 0.0
  %186 = vmatpush1.msra.mxu0 0.0
  %187 = vmatprep.subr.mxu0 0.0
  %188 = vmatpush1.msra.mxu0 0.0
  %189 = vmatprep.subr.mxu0 0.0
  %190 = vmatpush1.msra.mxu0 0.0
  %191 = vmatprep.subr.mxu0 0.0
  %192 = vmatpush1.msra.mxu0 0.0
  %193 = vmatprep.subr.mxu0 0.0
  %194 = vmatpush1.msra.mxu0 0.0
  %195 = vmatprep.subr.mxu0 0.0
  %196 = vmatpush1.msra.mxu0 0.0
  %197 = vmatprep.subr.mxu0 0.0
  %198 = vmatpush1.msra.mxu0 0.0
  %199 = vmatprep.subr.mxu0 0.0
  %200 = vmatpush1.msra.mxu0 0.0
  %201 = vmatprep.subr.mxu0 0.0
  %202 = vmatpush1.msra.mxu0 0.0
  %203 = vmatprep.subr.mxu0 0.0
  %204 = vmatpush1.msra.mxu0 0.0
  %205 = vmatprep.subr.mxu0 0.0
  %206 = vmatpush1.msra.mxu0 0.0
  %207 = vmatprep.subr.mxu0 0.0
  %208 = vmatpush1.msra.mxu0 0.0
  %209 = vmatprep.subr.mxu0 0.0
  %210 = vmatpush1.msra.mxu0 0.0
  %211 = vmatprep.subr.mxu0 0.0
  %212 = vmatpush1.msra.mxu0 0.0
  %213 = vmatprep.subr.mxu0 0.0
  %214 = vmatpush1.msra.mxu0 0.0
  %215 = vmatprep.subr.mxu0 0.0
  %216 = vmatpush1.msra.mxu0 0.0
  %217 = vmatprep.subr.mxu0 0.0
  %218 = vmatpush1.msra.mxu0 0.0
  %219 = vmatprep.mubr.f32.mxu0 0.0
  %220 = vmatmul.mubr.f32.gmra.mrb[0].mxu0 %v144
  %v221 = vpop.f32.mrb[0].mxu0
  %v222 = vadd.f32 %v124, %v221
  %v223 = vpop.f32.mrb[0].mxu0
  %224 = vmatprep.mubr.f32.mxu0 0.0
  %225 = vmatmul.mubr.f32.gmra.mrb[0].mxu0 %v147
  %v226 = vpop.f32.mrb[0].mxu0
  %v227 = vadd.f32 %v129, %v226
  %v228 = vpop.f32.mrb[0].mxu0
  %229 = vmatprep.mubr.f32.mxu0 0.0
  %230 = vmatmul.mubr.f32.gmra.mrb[0].mxu0 %v150
  %v231 = vpop.f32.mrb[0].mxu0
  %v232 = vadd.f32 %v134, %v231
  %v233 = vpop.f32.mrb[0].mxu0
  %234 = vmatprep.mubr.f32.mxu0 0.0
  %235 = vmatmul.mubr.f32.gmra.mrb[0].mxu0 %v153
  %v236 = vpop.f32.mrb[0].mxu0
  %v237 = vadd.f32 %v139, %v236
  %v238 = vpop.f32.mrb[0].mxu0
  %239 = vdwg.mxu0
  %v240 = vld [vmem:[%s5] sm:$0xff]
  %v241 = vld [vmem:[%s5 + $0x8] sm:$0xff]
  %v242 = vld [vmem:[%s5 + $0x10] sm:$0xff]
  %v243 = vld [vmem:[%s5 + $0x18] sm:$0xff]
  %v244 = vld [vmem:[%s4] sm:$0xff]
  %v245 = vld [vmem:[%s4 + $0x8] sm:$0xff]
  %v246 = vld [vmem:[%s4 + $0x10] sm:$0xff]
  %v247 = vld [vmem:[%s4 + $0x18] sm:$0xff]
  %249 = vset.pattern.permute.xlu0 0
  %250 = vperm.xlu0 %249, %v244
  %v251 = vpop.permute.xlu0 %250
  %254 = vset.pattern.permute.xlu0 0
  %255 = vperm.xlu0 %254, %v245
  %v256 = vpop.permute.xlu0 %255
  %259 = vset.pattern.permute.xlu0 0
  %260 = vperm.xlu0 %259, %v246
  %v261 = vpop.permute.xlu0 %260
  %264 = vset.pattern.permute.xlu0 0
  %265 = vperm.xlu0 %264, %v247
  %v266 = vpop.permute.xlu0 %265
  %v268 = vadd.f32 %v222, %v251
  %v269 = vadd.f32 %v227, %v256
  %v270 = vadd.f32 %v232, %v261
  %v271 = vadd.f32 %v237, %v266
  %v272 = vmax.f32 %v268, 0.0
  %v273 = vmax.f32 %v269, 0.0
  %v274 = vmax.f32 %v270, 0.0
  %v275 = vmax.f32 %v271, 0.0
  %v276 = vld [vmem:[%s6] sm:$0xff]
  %v277 = vld [vmem:[%s6 + $0x8] sm:$0xff]
  %v278 = vld [vmem:[%s6 + $0x10] sm:$0xff]
  %v279 = vld [vmem:[%s6 + $0x18] sm:$0xff]
  %281 = vset.pattern.permute.xlu0 0
  %282 = vperm.xlu0 %281, %v276
  %v283 = vpop.permute.xlu0 %282
  %286 = vset.pattern.permute.xlu0 0
  %287 = vperm.xlu0 %286, %v277
  %v288 = vpop.permute.xlu0 %287
  %291 = vset.pattern.permute.xlu0 0
  %292 = vperm.xlu0 %291, %v278
  %v293 = vpop.permute.xlu0 %292
  %296 = vset.pattern.permute.xlu0 0
  %297 = vperm.xlu0 %296, %v279
  %v298 = vpop.permute.xlu0 %297
  %vm300 = vcmask 261120
  %v302 = vsel %vm300, %v240, 0
  %v305 = vsel %vm300, %v241, 0
  %v308 = vsel %vm300, %v242, 0
  %v311 = vsel %vm300, %v243, 0
  %313 = vmatprep.subr.mxu0 0.0
  %314 = vmatpush1.msra.mxu0 %v272
  %315 = vmatprep.subr.mxu0 0.0
  %316 = vmatpush1.msra.mxu0 %v273
  %317 = vmatprep.subr.mxu0 0.0
  %318 = vmatpush1.msra.mxu0 %v274
  %319 = vmatprep.subr.mxu0 0.0
  %320 = vmatpush1.msra.mxu0 %v275
  %321 = vmatprep.subr.mxu0 0.0
  %322 = vmatpush1.msra.mxu0 0.0
  %323 = vmatprep.subr.mxu0 0.0
  %324 = vmatpush1.msra.mxu0 0.0
  %325 = vmatprep.subr.mxu0 0.0
  %326 = vmatpush1.msra.mxu0 0.0
  %327 = vmatprep.subr.mxu0 0.0
  %328 = vmatpush1.msra.mxu0 0.0
  %329 = vmatprep.subr.mxu0 0.0
  %330 = vmatpush1.msra.mxu0 0.0
  %331 = vmatprep.subr.mxu0 0.0
  %332 = vmatpush1.msra.mxu0 0.0
  %333 = vmatprep.subr.mxu0 0.0
  %334 = vmatpush1.msra.mxu0 0.0
  %335 = vmatprep.subr.mxu0 0.0
  %336 = vmatpush1.msra.mxu0 0.0
  %337 = vmatprep.subr.mxu0 0.0
  %338 = vmatpush1.msra.mxu0 0.0
  %339 = vmatprep.subr.mxu0 0.0
  %340 = vmatpush1.msra.mxu0 0.0
  %341 = vmatprep.subr.mxu0 0.0
  %342 = vmatpush1.msra.mxu0 0.0
  %343 = vmatprep.subr.mxu0 0.0
  %344 = vmatpush1.msra.mxu0 0.0
  %345 = vmatprep.subr.mxu0 0.0
  %346 = vmatpush1.msra.mxu0 0.0
  %347 = vmatprep.subr.mxu0 0.0
  %348 = vmatpush1.msra.mxu0 0.0
  %349 = vmatprep.subr.mxu0 0.0
  %350 = vmatpush1.msra.mxu0 0.0
  %351 = vmatprep.subr.mxu0 0.0
  %352 = vmatpush1.msra.mxu0 0.0
  %353 = vmatprep.subr.mxu0 0.0
  %354 = vmatpush1.msra.mxu0 0.0
  %355 = vmatprep.subr.mxu0 0.0
  %356 = vmatpush1.msra.mxu0 0.0
  %357 = vmatprep.subr.mxu0 0.0
  %358 = vmatpush1.msra.mxu0 0.0
  %359 = vmatprep.subr.mxu0 0.0
  %360 = vmatpush1.msra.mxu0 0.0
  %361 = vmatprep.subr.mxu0 0.0
  %362 = vmatpush1.msra.mxu0 0.0
  %363 = vmatprep.subr.mxu0 0.0
  %364 = vmatpush1.msra.mxu0 0.0
  %365 = vmatprep.subr.mxu0 0.0
  %366 = vmatpush1.msra.mxu0 0.0
  %367 = vmatprep.subr.mxu0 0.0
  %368 = vmatpush1.msra.mxu0 0.0
  %369 = vmatprep.subr.mxu0 0.0
  %370 = vmatpush1.msra.mxu0 0.0
  %371 = vmatprep.subr.mxu0 0.0
  %372 = vmatpush1.msra.mxu0 0.0
  %373 = vmatprep.subr.mxu0 0.0
  %374 = vmatpush1.msra.mxu0 0.0
  %375 = vmatprep.subr.mxu0 0.0
  %376 = vmatpush1.msra.mxu0 0.0
  %377 = vmatprep.mubr.f32.mxu0 0.0
  %378 = vmatmul.mubr.f32.gmra.mrb[0].mxu0 %v302
  %v379 = vpop.f32.mrb[0].mxu0
  %v380 = vadd.f32 %v283, %v379
  %v381 = vpop.f32.mrb[0].mxu0
  %382 = vmatprep.mubr.f32.mxu0 0.0
  %383 = vmatmul.mubr.f32.gmra.mrb[0].mxu0 %v305
  %v384 = vpop.f32.mrb[0].mxu0
  %v385 = vadd.f32 %v288, %v384
  %v386 = vpop.f32.mrb[0].mxu0
  %387 = vmatprep.mubr.f32.mxu0 0.0
  %388 = vmatmul.mubr.f32.gmra.mrb[0].mxu0 %v308
  %v389 = vpop.f32.mrb[0].mxu0
  %v390 = vadd.f32 %v293, %v389
  %v391 = vpop.f32.mrb[0].mxu0
  %392 = vmatprep.mubr.f32.mxu0 0.0
  %393 = vmatmul.mubr.f32.gmra.mrb[0].mxu0 %v311
  %v394 = vpop.f32.mrb[0].mxu0
  %v395 = vadd.f32 %v298, %v394
  %v396 = vpop.f32.mrb[0].mxu0
  %397 = vdwg.mxu0
  %v398 = vmax.f32 %v380, 0.0
  %v399 = vmax.f32 %v385, 0.0
  %v400 = vmax.f32 %v390, 0.0
  %v401 = vmax.f32 %v395, 0.0
  %v402 = vld [vmem:[%s7] sm:$0xff]
  %v403 = vld [vmem:[%s7 + $0x8] sm:$0xff]
  %v404 = vld [vmem:[%s7 + $0x10] sm:$0xff]
  %v405 = vld [vmem:[%s7 + $0x18] sm:$0xff]
  %407 = vset.pattern.permute.xlu0 0
  %408 = vperm.xlu0 %407, %v402
  %v409 = vpop.permute.xlu0 %408
  %412 = vset.pattern.permute.xlu0 0
  %413 = vperm.xlu0 %412, %v403
  %v414 = vpop.permute.xlu0 %413
  %417 = vset.pattern.permute.xlu0 0
  %418 = vperm.xlu0 %417, %v404
  %v419 = vpop.permute.xlu0 %418
  %422 = vset.pattern.permute.xlu0 0
  %423 = vperm.xlu0 %422, %v405
  %v424 = vpop.permute.xlu0 %423
  %v426 = vmul.f32 %v398, %v409
  %v427 = vmul.f32 %v399, %v414
  %v428 = vmul.f32 %v400, %v419
  %v429 = vmul.f32 %v401, %v424
  %vm430 = vcmask 64512
  %v431 = vsel %vm430, %v426, 0.0
  %v432 = vsel %vm430, %v427, 0.0
  %v433 = vadd.f32 %v431, %v432
  %v434 = vsel %vm430, %v428, 0.0
  %v435 = vadd.f32 %v433, %v434
  %v436 = vsel %vm430, %v429, 0.0
  %v437 = vadd.f32 %v435, %v436
  %v438 = vrot.slane %v437, 4
  %v439 = vadd.f32 %v437, %v438
  %v440 = vrot.slane %v439, 2
  %v441 = vadd.f32 %v439, %v440
  %v442 = vrot.slane %v441, 1
  %v443 = vadd.f32 %v441, %v442
  %vm444 = vcmask 57344
  %445 = vst.msk [vmem:[%s8] sm:$0x1] %vm444, %v443
  // Predicated region
  $region34: #{reward_net_forward.1} parent=0 // pred_check
    _
  $region35: #{reward_net_forward.1} parent=0 // pred_check_branch
    %447 = sbr.rel (0) target = $region37
  $region36: #{reward_net_forward.1} parent=0 // pred_region
    _
  $region37: #{reward_net_forward.1} parent=0 // pred_fallthru
    _
  // Predicated region
  $region38: #{reward_net_forward.1} parent=0 // pred_check
    _
  $region39: #{reward_net_forward.1} parent=0 // pred_check_branch
    %449 = sbr.rel (0) target = $region41
  $region40: #{reward_net_forward.1} parent=0 // pred_region
    _
  $region41: #{reward_net_forward.1} parent=0 // pred_fallthru
    _

</llo_original>
